<compile_context>
chip_gen: v7x
topology: tpu7x:2x2x1
jax: 0.10.0
libtpu: 0.0.40
codegen_flags: <defaults>
</compile_context>

<pallas_src>
import math

import jax
import jax.numpy as jnp
from jax.experimental import pallas as pl
from jax.experimental.pallas import tpu as pltpu


def _round_up(v, m):
    return (v + m - 1) // m * m


def _linear_kernel_fused(x_ref, w_ref, b_ref, o_ref):
    # Single K block: fuse matmul + bias + cast, write output tile directly.
    acc = jnp.dot(x_ref[...], w_ref[...], preferred_element_type=jnp.float32)
    o_ref[...] = (acc + b_ref[...].astype(jnp.float32)).astype(o_ref.dtype)


def _linear_kernel_acc(x_ref, w_ref, b_ref, o_ref, acc_ref):
    k = pl.program_id(2)

    @pl.when(k == 0)
    def _():
        acc_ref[...] = jnp.zeros_like(acc_ref)

    # MXU matmul with f32 accumulation.
    acc_ref[...] += jnp.dot(
        x_ref[...], w_ref[...], preferred_element_type=jnp.float32
    )

    @pl.when(k == pl.num_programs(2) - 1)
    def _():
        # Bias add (f32) + downcast + store exactly once, on the last K step.
        o_ref[...] = (acc_ref[...] + b_ref[...].astype(jnp.float32)).astype(
            o_ref.dtype
        )


def linear_forward(x, weight_t, bias, *, tm=256, tn=512, tk=512,
                   compute_dtype=None):
    """Forward pass of Linear.

    x:        (..., in_dim)
    weight_t: (in_dim, out_dim)   -- weight stored pre-transposed (no per-call .T)
    bias:     (out_dim,)
    compute_dtype: optionally cast x / weight to e.g. jnp.bfloat16 for the MXU
                   (accumulation and bias add stay in f32).
    """
    in_dim, out_dim = weight_t.shape
    lead_shape = x.shape[:-1]
    out_dtype = x.dtype

    x2d = x.reshape(-1, in_dim)
    m = x2d.shape[0]

    # Tiny-M (decode-style) calls: pure grid-step overhead in Pallas, let XLA
    # handle the GEMV directly.
    if m < 8:
        y = (x2d.astype(jnp.float32) @ weight_t.astype(jnp.float32)
             + bias.astype(jnp.float32)).astype(out_dtype)
        return y.reshape(*lead_shape, out_dim)

    if compute_dtype is not None:
        x2d = x2d.astype(compute_dtype)
        weight_t = weight_t.astype(compute_dtype)

    in_itemsize = jnp.dtype(x2d.dtype).itemsize
    out_itemsize = jnp.dtype(out_dtype).itemsize
    b_itemsize = jnp.dtype(bias.dtype).itemsize

    # Sublane packing of the compute dtype: 8 rows/vreg for 4-byte, 16 for
    # 2-byte, 32 for 1-byte types.  Keeps the M tile layout-clean.
    sub = {4: 8, 2: 16, 1: 32}.get(in_itemsize, 8)

    # Clamp tiles to the (aligned) problem size; N/K tiles stay 128-aligned so
    # the output tile is lane-dense and the MXU sees full tiles.
    tm = max(sub, min(_round_up(tm, sub), _round_up(m, sub)))
    tn = max(128, min(_round_up(tn, 128), _round_up(out_dim, 128)))
    tk = max(128, min(_round_up(tk, 128), _round_up(in_dim, 128)))

    mp = _round_up(m, tm)
    np_ = _round_up(out_dim, tn)
    kp = _round_up(in_dim, tk)

    # Zero-pad so padded K rows/cols contribute nothing to the accumulation.
    if (mp, kp) != (m, in_dim):
        x2d = jnp.pad(x2d, ((0, mp - m), (0, kp - in_dim)))
    w_p = weight_t
    if (kp, np_) != (in_dim, out_dim):
        w_p = jnp.pad(weight_t, ((0, kp - in_dim), (0, np_ - out_dim)))
    b_p = bias if np_ == out_dim else jnp.pad(bias, (0, np_ - out_dim))
    b2d = b_p.reshape(1, np_)

    gm, gn, gk = mp // tm, np_ // tn, kp // tk

    # Double-buffered tile footprint + accumulator scratch, with headroom.
    vmem_needed = (
        2 * (tm * tk * in_itemsize + tk * tn * in_itemsize
             + tn * b_itemsize + tm * tn * out_itemsize)
        + tm * tn * 4
    )
    vmem_limit = int(min(100 * 1024 * 1024,
                         max(2 * vmem_needed, 32 * 1024 * 1024)))

    cost = pl.CostEstimate(
        flops=2 * mp * np_ * kp,
        transcendentals=0,
        bytes_accessed=(mp * kp * in_itemsize + kp * np_ * in_itemsize
                        + np_ * b_itemsize + mp * np_ * out_itemsize),
    )

    if gk == 1:
        # Single K block: 2-D grid, no accumulator scratch, fused store.
        grid_spec = pltpu.PrefetchScalarGridSpec(
            num_scalar_prefetch=0,
            grid=(gm, gn),
            in_specs=[
                pl.BlockSpec((tm, tk), lambda i, j: (i, 0)),   # x tile
                pl.BlockSpec((tk, tn), lambda i, j: (0, j)),   # W^T tile
                pl.BlockSpec((1, tn), lambda i, j: (0, j)),    # bias tile
            ],
            out_specs=pl.BlockSpec((tm, tn), lambda i, j: (i, j)),
        )
        kernel = _linear_kernel_fused
        dims = ("parallel", "parallel")
    else:
        # Multi K block: 3-D grid with f32 accumulator, reduction axis last.
        grid_spec = pltpu.PrefetchScalarGridSpec(
            num_scalar_prefetch=0,
            grid=(gm, gn, gk),
            in_specs=[
                pl.BlockSpec((tm, tk), lambda i, j, k: (i, k)),   # x tile
                pl.BlockSpec((tk, tn), lambda i, j, k: (k, j)),   # W^T tile
                pl.BlockSpec((1, tn), lambda i, j, k: (0, j)),    # bias tile
            ],
            out_specs=pl.BlockSpec((tm, tn), lambda i, j, k: (i, j)),
            scratch_shapes=[pltpu.VMEM((tm, tn), jnp.float32)],
        )
        kernel = _linear_kernel_acc
        dims = ("parallel", "parallel", "arbitrary")

    out = pl.pallas_call(
        kernel,
        out_shape=jax.ShapeDtypeStruct((mp, np_), out_dtype),
        grid_spec=grid_spec,
        compiler_params=pltpu.CompilerParams(
            dimension_semantics=dims,
            vmem_limit_bytes=vmem_limit,
        ),
        cost_estimate=cost,
    )(x2d, w_p, b2d)

    return out[:m, :out_dim].reshape(*lead_shape, out_dim)


def init_linear_params(key, in_dim, out_dim, w_init="linear"):
    """Deterministic params matching the PyTorch module's __init__.

    Returns weight already transposed to (in_dim, out_dim) so the forward pass
    never pays an HBM transpose.

    weight: xavier_uniform with gain = calculate_gain(w_init) ('linear' -> 1.0)
    bias:   nn.Linear default uniform(-1/sqrt(in_dim), 1/sqrt(in_dim))
    """
    kw, kb = jax.random.split(key)
    gain = 1.0  # calculate_gain('linear') == 1.0
    bound_w = gain * math.sqrt(6.0 / (in_dim + out_dim))
    weight = jax.random.uniform(
        kw, (out_dim, in_dim), minval=-bound_w, maxval=bound_w, dtype=jnp.float32
    )
    bound_b = 1.0 / math.sqrt(in_dim)
    bias = jax.random.uniform(
        kb, (out_dim,), minval=-bound_b, maxval=bound_b, dtype=jnp.float32
    )
    weight_t = jnp.asarray(weight.T)  # store (in_dim, out_dim) once, at init
    return weight_t, bias


if __name__ == "__main__":
    key = jax.random.PRNGKey(0)
    k_x, k_p, k_x2, k_p2 = jax.random.split(key, 4)

    # Small shapes consistent with the module: (batch, seq, in_dim) -> out_dim.
    batch, seq, in_dim, out_dim = 2, 8, 32, 16
    x = jax.random.normal(k_x, (batch, seq, in_dim), dtype=jnp.float32)
    weight_t, bias = init_linear_params(k_p, in_dim, out_dim, w_init="linear")

    y = linear_forward(x, weight_t, bias)
    jax.block_until_ready(y)

    y_ref = x @ weight_t + bias
    assert y.shape == (batch, seq, out_dim)
    assert jnp.allclose(y, y_ref, atol=1e-5, rtol=1e-5)

    # Also exercise the multi-K-block accumulator path.
    in_dim2, out_dim2 = 384, 256
    x2 = jax.random.normal(k_x2, (batch, seq, in_dim2), dtype=jnp.float32)
    weight_t2, bias2 = init_linear_params(k_p2, in_dim2, out_dim2)
    y2 = linear_forward(x2, weight_t2, bias2, tk=128)
    jax.block_until_ready(y2)
    y2_ref = x2 @ weight_t2 + bias2
    assert jnp.allclose(y2, y2_ref, atol=1e-4, rtol=1e-4)

    print("KERNEL_OK")
</pallas_src>

<mosaic_0001>
module attributes {stable_mosaic.version = 11 : i64} {
  func.func @_linear_kernel_fused(%arg0: i32, %arg1: i32, %arg2: memref<16x128xf32, #tpu.memory_space<vmem>>, %arg3: memref<128x128xf32, #tpu.memory_space<vmem>>, %arg4: memref<1x128xf32, #tpu.memory_space<vmem>>, %arg5: memref<16x128xf32, #tpu.memory_space<vmem>>) attributes {dimension_semantics = [#tpu.dimension_semantics<parallel>, #tpu.dimension_semantics<parallel>], iteration_bounds = array<i64: 1, 1>, scalar_prefetch = 0 : i64, scratch_operands = 0 : i64, tpu.core_type = #tpu.core_type<tc>, window_params = [{transform_indices = @transform_0, window_bounds = array<i64: 16, 128>}, {transform_indices = @transform_1, window_bounds = array<i64: 128, 128>}, {transform_indices = @transform_2, window_bounds = array<i64: 1, 128>}, {transform_indices = @transform_3, window_bounds = array<i64: 16, 128>}]} {
    %c0 = arith.constant 0 : index
    %c0_0 = arith.constant 0 : index
    %0 = vector.load %arg2[%c0, %c0_0] : memref<16x128xf32, #tpu.memory_space<vmem>>, vector<16x128xf32>
    %c0_1 = arith.constant 0 : index
    %c0_2 = arith.constant 0 : index
    %1 = vector.load %arg3[%c0_1, %c0_2] : memref<128x128xf32, #tpu.memory_space<vmem>>, vector<128x128xf32>
    %cst = arith.constant dense<0.000000e+00> : vector<16x128xf32>
    %2 = tpu.matmul %0, %1, %cst {dimension_numbers = #tpu.dot_dimension_numbers<[1], [0], [0], [1], [0, 0, 1, 1], [], []>} : vector<16x128xf32>, vector<128x128xf32>, vector<16x128xf32> -> vector<16x128xf32>
    %c0_3 = arith.constant 0 : index
    %c0_4 = arith.constant 0 : index
    %3 = vector.load %arg4[%c0_3, %c0_4] : memref<1x128xf32, #tpu.memory_space<vmem>>, vector<1x128xf32>
    %4 = vector.broadcast %3 : vector<1x128xf32> to vector<16x128xf32>
    %5 = arith.addf %2, %4 : vector<16x128xf32>
    %c0_5 = arith.constant 0 : index
    %c0_6 = arith.constant 0 : index
    %6 = vector.load %arg5[%c0_5, %c0_6] : memref<16x128xf32, #tpu.memory_space<vmem>>, vector<16x128xf32>
    tpu.vector_store %arg5[%c0_5, %c0_6], %5 {strides = array<i32>} : memref<16x128xf32, #tpu.memory_space<vmem>>, vector<16x128xf32>,
    return
  }
  func.func @transform_0(%arg0: i32, %arg1: i32) -> (i32, i32) {
    %c0_i32 = arith.constant 0 : i32
    %c0_i32_0 = arith.constant 0 : i32
    return %arg0, %c0_i32 : i32, i32
  }
  func.func @transform_1(%arg0: i32, %arg1: i32) -> (i32, i32) {
    %c0_i32 = arith.constant 0 : i32
    %c0_i32_0 = arith.constant 0 : i32
    return %c0_i32, %arg1 : i32, i32
  }
  func.func @transform_2(%arg0: i32, %arg1: i32) -> (i32, i32) {
    %c0_i32 = arith.constant 0 : i32
    %c0_i32_0 = arith.constant 0 : i32
    return %c0_i32, %arg1 : i32, i32
  }
  func.func @transform_3(%arg0: i32, %arg1: i32) -> (i32, i32) {
    %c0_i32 = arith.constant 0 : i32
    return %arg0, %arg1 : i32, i32
  }
}

</mosaic_0001>

<llo_original>
// kernel: tpu_custom_call.1
$region0: #{tpu_custom_call.1}
  #allocation0 [shape = 'u32[]', space=smem, size = 0x4, offset = 0x4, fixed_abs, tag = 'smem constant byte address 0x4 - core index']
  #allocation1 [shape = 'u32[144,128]{1,0:T(1,128)}', space=vmem, size = 0x12000, scoped, tag = 'internal scratch']
  %s0 = inlined_call_operand.hbm [shape: f32[16,128], index: 0, kind: input, shape index: {}]
  %s1 = inlined_call_operand.hbm [shape: f32[128,128], index: 1, kind: input, shape index: {}]
  %s2 = inlined_call_operand.vmem [shape: f32[1,128], index: 2, kind: input, shape index: {}]
  %s3 = inlined_call_operand.hbm [shape: f32[16,128], index: 3, kind: output, shape index: {}]
  %s4 = sld [smem:[#allocation0]]
  $region30: #{tpu_custom_call.1} parent=0
    _
  %s6 = ssub.s32 1, %s4
  %s7 = scalar_select 0, %s6, %s4
  $region1: #{tpu_custom_call.1} parent=0
    #allocation2 [shape = 'u8[8192]{0}', space=vmem, size = 0x2000, scoped, tag = 'input window, operand 0, single buffered']
    #allocation3 [shape = 's32[1]{0}', space=sflag, size = 0x4, scoped, tag = 'scoped memory for tpu_custom_call.1']
    #allocation4 [shape = 's32[1]{0}', space=sflag, size = 0x4, scoped, tag = 'scoped memory for tpu_custom_call.1']
    #allocation5 [shape = 'u8[65536]{0}', space=vmem, size = 0x10000, scoped, tag = 'input window, operand 1, single buffered']
    #allocation6 [shape = 's32[1]{0}', space=sflag, size = 0x4, scoped, tag = 'scoped memory for tpu_custom_call.1']
    #allocation7 [shape = 'u8[8192]{0}', space=vmem, size = 0x2000, scoped, tag = 'output window, operand 0, single buffered']
    %8 = vsyncpa [#allocation3], 0
    %9 = vsyncpa [#allocation6], 0
    %10 = vsyncpa [#allocation4], 0
    // Predicated region
    $region2: #{tpu_custom_call.1} parent=1 // pred_check
      _
    $region3: #{tpu_custom_call.1} parent=1 // pred_check_branch
      %12 = sbr.rel (0) target = $region5
    $region4: #{tpu_custom_call.1} parent=1 // pred_region
      %s14 = ssub.s32 256, 256
      %15 = vsyncadd [#allocation3], %s14
      %s16 = sshll.u32 [#allocation2], 4
      %s17 = int_to_ptr.vmem [resolvable:$true] %s16
      %22 = dma.hbm_to_vmem [thread:$0]  %s0, 256, %s17, [#allocation3], 128, 128, 8
    $region5: #{tpu_custom_call.1} parent=1 // pred_fallthru
      _
    // Predicated region
    $region6: #{tpu_custom_call.1} parent=1 // pred_check
      _
    $region7: #{tpu_custom_call.1} parent=1 // pred_check_branch
      %24 = sbr.rel (0) target = $region9
    $region8: #{tpu_custom_call.1} parent=1 // pred_region
      %s26 = ssub.s32 2048, 2048
      %27 = vsyncadd [#allocation6], %s26
      %s28 = sshll.u32 [#allocation5], 4
      %s29 = int_to_ptr.vmem [resolvable:$true] %s28
      %34 = dma.hbm_to_vmem [thread:$0]  %s1, 2048, %s29, [#allocation6], 128, 128, 8
    $region9: #{tpu_custom_call.1} parent=1 // pred_fallthru
      _
    // Predicated region
    $region10: #{tpu_custom_call.1} parent=1 // pred_check
      _
    $region11: #{tpu_custom_call.1} parent=1 // pred_check_branch
      %36 = sbr.rel (0) target = $region13
    $region12: #{tpu_custom_call.1} parent=1 // pred_region
      _
    $region13: #{tpu_custom_call.1} parent=1 // pred_fallthru
      _
    // Predicated region
    $region14: #{tpu_custom_call.1} parent=1 // pred_check
      _
    $region15: #{tpu_custom_call.1} parent=1 // pred_check_branch
      %38 = sbr.rel (0) target = $region17
    $region16: #{tpu_custom_call.1} parent=1 // pred_region
      %39 = dma.done [#allocation3], 256
    $region17: #{tpu_custom_call.1} parent=1 // pred_fallthru
      _
    // Predicated region
    $region18: #{tpu_custom_call.1} parent=1 // pred_check
      _
    $region19: #{tpu_custom_call.1} parent=1 // pred_check_branch
      %41 = sbr.rel (0) target = $region21
    $region20: #{tpu_custom_call.1} parent=1 // pred_region
      %42 = dma.done [#allocation6], 2048
    $region21: #{tpu_custom_call.1} parent=1 // pred_fallthru
      _
    %v43 = vld [vmem:[#allocation2] sm:$0xff]
    %v44 = vld [vmem:[#allocation2 + $0x8] sm:$0xff]
    %v45 = vld [vmem:[#allocation5] sm:$0xff]
    %v46 = vld [vmem:[#allocation5 + $0x8] sm:$0xff]
    %v47 = vld [vmem:[#allocation5 + $0x10] sm:$0xff]
    %v48 = vld [vmem:[#allocation5 + $0x18] sm:$0xff]
    %v49 = vld [vmem:[#allocation5 + $0x20] sm:$0xff]
    %v50 = vld [vmem:[#allocation5 + $0x28] sm:$0xff]
    %v51 = vld [vmem:[#allocation5 + $0x30] sm:$0xff]
    %v52 = vld [vmem:[#allocation5 + $0x38] sm:$0xff]
    %v53 = vld [vmem:[#allocation5 + $0x40] sm:$0xff]
    %v54 = vld [vmem:[#allocation5 + $0x48] sm:$0xff]
    %v55 = vld [vmem:[#allocation5 + $0x50] sm:$0xff]
    %v56 = vld [vmem:[#allocation5 + $0x58] sm:$0xff]
    %v57 = vld [vmem:[#allocation5 + $0x60] sm:$0xff]
    %v58 = vld [vmem:[#allocation5 + $0x68] sm:$0xff]
    %v59 = vld [vmem:[#allocation5 + $0x70] sm:$0xff]
    %v60 = vld [vmem:[#allocation5 + $0x78] sm:$0xff]
    %v61 = vld [vmem:[%s2] sm:$0x1]
    %v63 = vlaneseq
    %v64 = vshrl.u32 %v63, 7
    %v65 = vsub.s32 0, %v64
    %v66 = vrot.slane %v61, %v65
    %68 = vmatprep.subr.mxu0 0.0
    %69 = vmatpush1.msra.mxu0 %v45
    %70 = vmatprep.subr.mxu0 0.0
    %71 = vmatpush1.msra.mxu0 %v46
    %72 = vmatprep.subr.mxu0 0.0
    %73 = vmatpush1.msra.mxu0 %v47
    %74 = vmatprep.subr.mxu0 0.0
    %75 = vmatpush1.msra.mxu0 %v48
    %76 = vmatprep.subr.mxu0 0.0
    %77 = vmatpush1.msra.mxu0 %v49
    %78 = vmatprep.subr.mxu0 0.0
    %79 = vmatpush1.msra.mxu0 %v50
    %80 = vmatprep.subr.mxu0 0.0
    %81 = vmatpush1.msra.mxu0 %v51
    %82 = vmatprep.subr.mxu0 0.0
    %83 = vmatpush1.msra.mxu0 %v52
    %84 = vmatprep.subr.mxu0 0.0
    %85 = vmatpush1.msra.mxu0 %v53
    %86 = vmatprep.subr.mxu0 0.0
    %87 = vmatpush1.msra.mxu0 %v54
    %88 = vmatprep.subr.mxu0 0.0
    %89 = vmatpush1.msra.mxu0 %v55
    %90 = vmatprep.subr.mxu0 0.0
    %91 = vmatpush1.msra.mxu0 %v56
    %92 = vmatprep.subr.mxu0 0.0
    %93 = vmatpush1.msra.mxu0 %v57
    %94 = vmatprep.subr.mxu0 0.0
    %95 = vmatpush1.msra.mxu0 %v58
    %96 = vmatprep.subr.mxu0 0.0
    %97 = vmatpush1.msra.mxu0 %v59
    %98 = vmatprep.subr.mxu0 0.0
    %99 = vmatpush1.msra.mxu0 %v60
    %100 = vmatprep.subr.mxu0 0.0
    %101 = vmatpush1.msra.mxu0 0.0
    %102 = vmatprep.subr.mxu0 0.0
    %103 = vmatpush1.msra.mxu0 0.0
    %104 = vmatprep.subr.mxu0 0.0
    %105 = vmatpush1.msra.mxu0 0.0
    %106 = vmatprep.subr.mxu0 0.0
    %107 = vmatpush1.msra.mxu0 0.0
    %108 = vmatprep.subr.mxu0 0.0
    %109 = vmatpush1.msra.mxu0 0.0
    %110 = vmatprep.subr.mxu0 0.0
    %111 = vmatpush1.msra.mxu0 0.0
    %112 = vmatprep.subr.mxu0 0.0
    %113 = vmatpush1.msra.mxu0 0.0
    %114 = vmatprep.subr.mxu0 0.0
    %115 = vmatpush1.msra.mxu0 0.0
    %116 = vmatprep.subr.mxu0 0.0
    %117 = vmatpush1.msra.mxu0 0.0
    %118 = vmatprep.subr.mxu0 0.0
    %119 = vmatpush1.msra.mxu0 0.0
    %120 = vmatprep.subr.mxu0 0.0
    %121 = vmatpush1.msra.mxu0 0.0
    %122 = vmatprep.subr.mxu0 0.0
    %123 = vmatpush1.msra.mxu0 0.0
    %124 = vmatprep.subr.mxu0 0.0
    %125 = vmatpush1.msra.mxu0 0.0
    %126 = vmatprep.subr.mxu0 0.0
    %127 = vmatpush1.msra.mxu0 0.0
    %128 = vmatprep.subr.mxu0 0.0
    %129 = vmatpush1.msra.mxu0 0.0
    %130 = vmatprep.subr.mxu0 0.0
    %131 = vmatpush1.msra.mxu0 0.0
    %132 = vmatprep.mubr.f32.mxu0 0.0
    %133 = vmatmul.mubr.f32.gmra.mrb[0].mxu0 %v43
    %v134 = vpop.f32.mrb[0].mxu0
    %v135 = vadd.f32 %v66, %v134
    %v136 = vpop.f32.mrb[0].mxu0
    %137 = vmatprep.mubr.f32.mxu0 0.0
    %138 = vmatmul.mubr.f32.gmra.mrb[0].mxu0 %v44
    %v139 = vpop.f32.mrb[0].mxu0
    %v140 = vadd.f32 %v66, %v139
    %v141 = vpop.f32.mrb[0].mxu0
    %142 = vdwg.mxu0
    %143 = vst [vmem:[#allocation7] sm:$0xff] %v135
    %144 = vst [vmem:[#allocation7 + $0x8] sm:$0xff] %v140
    // Predicated region
    $region22: #{tpu_custom_call.1} parent=1 // pred_check
      _
    $region23: #{tpu_custom_call.1} parent=1 // pred_check_branch
      %146 = sbr.rel (0) target = $region25
    $region24: #{tpu_custom_call.1} parent=1 // pred_region
      %s148 = ssub.s32 256, 256
      %149 = vsyncadd [#allocation4], %s148
      %s150 = sshll.u32 [#allocation7], 4
      %s151 = int_to_ptr.vmem [resolvable:$true] %s150
      %156 = dma.vmem_to_hbm [thread:$0]  %s151, 256, %s3, [#allocation4], 128, 128, 8
    $region25: #{tpu_custom_call.1} parent=1 // pred_fallthru
      _
    // Predicated region
    $region26: #{tpu_custom_call.1} parent=1 // pred_check
      _
    $region27: #{tpu_custom_call.1} parent=1 // pred_check_branch
      %158 = sbr.rel (0) target = $region29
    $region28: #{tpu_custom_call.1} parent=1 // pred_region
      %159 = dma.done [#allocation4], 256
    $region29: #{tpu_custom_call.1} parent=1 // pred_fallthru
      _
    %160 = vsyncpa [#allocation3], 1
    %161 = vsyncpa [#allocation6], 1
    %162 = vsyncpa [#allocation4], 1

</llo_original>
